<compile_context>
chip_gen: v7x
topology: tpu7x:2x2x1
jax: 0.10.0
libtpu: 0.0.40
codegen_flags: <defaults>
</compile_context>

<pallas_src>
import jax
import jax.numpy as jnp
from jax.experimental import pallas as pl
from jax.experimental.pallas import tpu as pltpu


def xor_kernel(x_ref, w1_ref, b1_ref, w2_ref, b2_ref, o_ref):
    # x keeps the caller's dtype; cast in-register (torch's features.float()),
    # saving the separate HBM round-trip a wrapper-side astype would cost.
    x = x_ref[...].astype(jnp.float32)              # (d_in, TB)
    d_in = x.shape[0]

    w1 = w1_ref[...]                                # (hidden, d_in) f32
    b1 = b1_ref[...]                                # (hidden, 1)    f32

    # Layer 1: z[i, b] = sum_k w1[i, k] * x[k, b] + b1[i]
    # d_in broadcast-FMAs over full (hidden, TB) tiles -> VPU only, no MXU.
    z = b1 + w1[:, 0:1] * x[0:1, :]
    for k in range(1, d_in):                        # d_in tiny & static -> unrolled
        z = z + w1[:, k:k + 1] * x[k:k + 1, :]
    h = jnp.tanh(z)                                 # (hidden, TB), EUP

    w2 = w2_ref[...]                                # (hidden, out_dim) f32
    out_dim = o_ref.shape[0]

    rows = []
    for j in range(out_dim):                        # out_dim tiny & static
        # sum over hidden units = cross-sublane reduce (XLU slot, frees VALU/MXU)
        yj = jnp.sum(w2[:, j:j + 1] * h, axis=0, keepdims=True) + b2_ref[j]
        rows.append(yj)                             # (1, TB)
    y = rows[0] if out_dim == 1 else jnp.concatenate(rows, axis=0)

    o_ref[...] = jax.nn.sigmoid(y)                  # (out_dim, TB), lane-dense store


def xor_forward(features, w1, b1, w2, b2):
    """features: (B, d_in), any float/int dtype. Returns (B, out_dim) float32.

    Parameter layouts: w1 (hidden, d_in), b1 (hidden, 1),
                       w2 (hidden, out_dim), b2 (out_dim,).
    """
    B, d_in = features.shape
    hidden = w1.shape[0]
    out_dim = w2.shape[1]

    # Put batch on the lane axis (layout plumbing stays in the wrapper).
    x_t = features.T                                # (d_in, B), original dtype

    # Pad batch to a multiple of 128 lanes so tiles are lane-aligned.
    b_pad = pl.cdiv(B, 128) * 128
    if b_pad != B:
        x_t = jnp.pad(x_t, ((0, 0), (0, b_pad - B)))

    # Largest aligned batch tile dividing the padded batch. Even a 2048-wide
    # f32 tile is tiny in VMEM (few tens of KiB double-buffered), so this is
    # safe on v7x's 64 MiB VMEM as well as v5e/v6e.
    tb = 128
    for cand in (2048, 1024, 512, 256):
        if b_pad % cand == 0:
            tb = cand
            break
    grid = (b_pad // tb,)

    out_t = pl.pallas_call(
        xor_kernel,
        out_shape=jax.ShapeDtypeStruct((out_dim, b_pad), jnp.float32),
        grid=grid,
        in_specs=[
            # x: blocked along the batch/lane axis -> auto double-buffered DMA.
            pl.BlockSpec((d_in, tb), lambda i: (0, i)),
            # Weights/biases: constant block index -> stay VMEM-resident
            # across all grid steps (no re-DMA).
            pl.BlockSpec((hidden, d_in), lambda i: (0, 0)),
            pl.BlockSpec((hidden, 1), lambda i: (0, 0)),
            pl.BlockSpec((hidden, out_dim), lambda i: (0, 0)),
            # b2: scalar(s) read from SMEM (no padded VMEM tile, scalar path).
            pl.BlockSpec(memory_space=pltpu.MemorySpace.SMEM),
        ],
        out_specs=pl.BlockSpec((out_dim, tb), lambda i: (0, i)),
        compiler_params=pltpu.CompilerParams(
            # Batch tiles are independent: sharded across both TensorCores on
            # v7x; harmless on single-TC v5e/v6e.
            dimension_semantics=("parallel",),
        ),
    )(x_t, w1, b1, w2, b2)

    return out_t[:, :B].T                           # back to (B, out_dim)


def init_params(key, input_dim, output_dim, hidden=8):
    # U(-1/sqrt(fan_in), +1/sqrt(fan_in)), mimicking nn.Linear defaults.
    k1, k2, k3, k4 = jax.random.split(key, 4)
    lim1 = 1.0 / (input_dim ** 0.5)
    lim2 = 1.0 / (hidden ** 0.5)
    w1 = jax.random.uniform(k1, (hidden, input_dim), jnp.float32, -lim1, lim1)
    b1 = jax.random.uniform(k2, (hidden, 1), jnp.float32, -lim1, lim1)
    w2 = jax.random.uniform(k3, (hidden, output_dim), jnp.float32, -lim2, lim2)
    b2 = jax.random.uniform(k4, (output_dim,), jnp.float32, -lim2, lim2)
    return w1, b1, w2, b2


def _reference(features, w1, b1, w2, b2):
    hp = jax.lax.Precision.HIGHEST
    h = jnp.tanh(jnp.dot(features.astype(jnp.float32), w1.T, precision=hp) + b1[:, 0])
    return jax.nn.sigmoid(jnp.dot(h, w2, precision=hp) + b2)


if __name__ == "__main__":
    key = jax.random.PRNGKey(0)
    k_in, k_in2, k_par = jax.random.split(key, 3)

    # XOR-style problem: input_dim=2, output_dim=1.
    input_dim, output_dim = 2, 1
    w1, b1, w2, b2 = init_params(k_par, input_dim, output_dim)

    # Case 1: tiny batch (single 128-lane tile after padding).
    batch = 8
    features = jax.random.uniform(k_in, (batch, input_dim), jnp.float32)
    out = jax.block_until_ready(xor_forward(features, w1, b1, w2, b2))
    ref = _reference(features, w1, b1, w2, b2)
    assert out.shape == (batch, output_dim)
    assert jnp.allclose(out, ref, atol=1e-5, rtol=1e-5)

    # Case 2: non-aligned batch -> exercises padding + multi-step grid with
    # VMEM-resident weights.
    batch2 = 300
    features2 = jax.random.uniform(k_in2, (batch2, input_dim), jnp.float32)
    out2 = jax.block_until_ready(xor_forward(features2, w1, b1, w2, b2))
    ref2 = _reference(features2, w1, b1, w2, b2)
    assert out2.shape == (batch2, output_dim)
    assert jnp.allclose(out2, ref2, atol=1e-5, rtol=1e-5)

    print("KERNEL_OK")
</pallas_src>

<mosaic_0001>
module attributes {stable_mosaic.version = 11 : i64} {
  func.func @xor_kernel(%arg0: i32, %arg1: memref<2x128xf32, #tpu.memory_space<vmem>>, %arg2: memref<8x2xf32, #tpu.memory_space<vmem>>, %arg3: memref<8x1xf32, #tpu.memory_space<vmem>>, %arg4: memref<8x1xf32, #tpu.memory_space<vmem>>, %arg5: memref<1xf32, #tpu.memory_space<smem>>, %arg6: memref<1x128xf32, #tpu.memory_space<vmem>>) attributes {dimension_semantics = [#tpu.dimension_semantics<parallel>], iteration_bounds = array<i64: 1>, scalar_prefetch = 0 : i64, scratch_operands = 0 : i64, tpu.core_type = #tpu.core_type<tc>, window_params = [{transform_indices = @transform_0, window_bounds = array<i64: 2, 128>}, {pipeline_mode = #tpu.pipeline_mode<synchronous>, transform_indices = @transform_1, window_bounds = array<i64: 8, 2>}, {pipeline_mode = #tpu.pipeline_mode<synchronous>, transform_indices = @transform_2, window_bounds = array<i64: 8, 1>}, {pipeline_mode = #tpu.pipeline_mode<synchronous>, transform_indices = @transform_3, window_bounds = array<i64: 8, 1>}, {transform_indices = @transform_4, window_bounds = array<i64: 1>}, {transform_indices = @transform_5, window_bounds = array<i64: 1, 128>}]} {
    %c0 = arith.constant 0 : index
    %c0_0 = arith.constant 0 : index
    %0 = vector.load %arg1[%c0, %c0_0] : memref<2x128xf32, #tpu.memory_space<vmem>>, vector<2x128xf32>
    %c0_1 = arith.constant 0 : index
    %c0_2 = arith.constant 0 : index
    %1 = vector.load %arg2[%c0_1, %c0_2] : memref<8x2xf32, #tpu.memory_space<vmem>>, vector<8x2xf32>
    %c0_3 = arith.constant 0 : index
    %c0_4 = arith.constant 0 : index
    %2 = vector.load %arg3[%c0_3, %c0_4] : memref<8x1xf32, #tpu.memory_space<vmem>>, vector<8x1xf32>
    %3 = vector.extract_strided_slice %1 {offsets = [0, 0], sizes = [8, 1], strides = [1, 1]} : vector<8x2xf32> to vector<8x1xf32>
    %4 = vector.extract_strided_slice %0 {offsets = [0, 0], sizes = [1, 128], strides = [1, 1]} : vector<2x128xf32> to vector<1x128xf32>
    %5 = vector.broadcast %3 : vector<8x1xf32> to vector<8x128xf32>
    %6 = vector.broadcast %4 : vector<1x128xf32> to vector<8x128xf32>
    %7 = arith.mulf %5, %6 : vector<8x128xf32>
    %8 = vector.broadcast %2 : vector<8x1xf32> to vector<8x128xf32>
    %9 = arith.addf %8, %7 : vector<8x128xf32>
    %10 = vector.extract_strided_slice %1 {offsets = [0, 1], sizes = [8, 1], strides = [1, 1]} : vector<8x2xf32> to vector<8x1xf32>
    %11 = vector.extract_strided_slice %0 {offsets = [1, 0], sizes = [1, 128], strides = [1, 1]} : vector<2x128xf32> to vector<1x128xf32>
    %12 = vector.broadcast %10 : vector<8x1xf32> to vector<8x128xf32>
    %13 = vector.broadcast %11 : vector<1x128xf32> to vector<8x128xf32>
    %14 = arith.mulf %12, %13 : vector<8x128xf32>
    %15 = arith.addf %9, %14 : vector<8x128xf32>
    %16 = math.tanh %15 : vector<8x128xf32>
    %c0_5 = arith.constant 0 : index
    %c0_6 = arith.constant 0 : index
    %17 = vector.load %arg4[%c0_5, %c0_6] : memref<8x1xf32, #tpu.memory_space<vmem>>, vector<8x1xf32>
    %18 = vector.broadcast %17 : vector<8x1xf32> to vector<8x128xf32>
    %19 = arith.mulf %18, %16 : vector<8x128xf32>
    %cst = arith.constant dense<0.000000e+00> : vector<128xf32>
    %20 = vector.multi_reduction <add>, %19, %cst [0] : vector<8x128xf32> to vector<128xf32>
    %21 = vector.shape_cast %20 : vector<128xf32> to vector<1x128xf32>
    %c0_7 = arith.constant 0 : index
    %22 = memref.load %arg5[%c0_7] : memref<1xf32, #tpu.memory_space<smem>>
    %23 = vector.broadcast %22 : f32 to vector<1x128xf32>
    %24 = arith.addf %21, %23 : vector<1x128xf32>
    %25 = arith.negf %24 : vector<1x128xf32>
    %26 = math.exp %25 : vector<1x128xf32>
    %cst_8 = arith.constant 1.000000e+00 : f32
    %27 = vector.broadcast %cst_8 : f32 to vector<1x128xf32>
    %28 = arith.addf %27, %26 : vector<1x128xf32>
    %29 = arith.divf %27, %28 : vector<1x128xf32>
    %c0_9 = arith.constant 0 : index
    %c0_10 = arith.constant 0 : index
    %30 = vector.load %arg6[%c0_9, %c0_10] : memref<1x128xf32, #tpu.memory_space<vmem>>, vector<1x128xf32>
    tpu.vector_store %arg6[%c0_9, %c0_10], %29 {strides = array<i32>} : memref<1x128xf32, #tpu.memory_space<vmem>>, vector<1x128xf32>,
    return
  }
  func.func @transform_0(%arg0: i32) -> (i32, i32) {
    %c0_i32 = arith.constant 0 : i32
    %c0_i32_0 = arith.constant 0 : i32
    return %c0_i32, %arg0 : i32, i32
  }
  func.func @transform_1(%arg0: i32) -> (i32, i32) {
    %c0_i32 = arith.constant 0 : i32
    %c0_i32_0 = arith.constant 0 : i32
    %c0_i32_1 = arith.constant 0 : i32
    return %c0_i32, %c0_i32_0 : i32, i32
  }
  func.func @transform_2(%arg0: i32) -> (i32, i32) {
    %c0_i32 = arith.constant 0 : i32
    %c0_i32_0 = arith.constant 0 : i32
    %c0_i32_1 = arith.constant 0 : i32
    return %c0_i32, %c0_i32_0 : i32, i32
  }
  func.func @transform_3(%arg0: i32) -> (i32, i32) {
    %c0_i32 = arith.constant 0 : i32
    %c0_i32_0 = arith.constant 0 : i32
    %c0_i32_1 = arith.constant 0 : i32
    return %c0_i32, %c0_i32_0 : i32, i32
  }
  func.func @transform_4(%arg0: i32) -> i32 {
    %c0_i32 = arith.constant 0 : i32
    %c0_i32_0 = arith.constant 0 : i32
    return %c0_i32 : i32
  }
  func.func @transform_5(%arg0: i32) -> (i32, i32) {
    %c0_i32 = arith.constant 0 : i32
    %c0_i32_0 = arith.constant 0 : i32
    return %c0_i32, %arg0 : i32, i32
  }
}

</mosaic_0001>

<llo_original>
// kernel: tpu_custom_call.1
$region0: #{tpu_custom_call.1}
  #allocation0 [shape = 'u32[]', space=smem, size = 0x4, offset = 0x4, fixed_abs, tag = 'smem constant byte address 0x4 - core index']
  #allocation1 [shape = 'u32[144,128]{1,0:T(1,128)}', space=vmem, size = 0x12000, scoped, tag = 'internal scratch']
  #allocation2 [shape = 'f32[1]{0:T(128)S(6)}', space=smem, size = 0x200, scoped, tag = 'scoped memory for tpu_custom_call.1']
  %s0 = inlined_call_operand.vmem [shape: f32[2,128], index: 0, kind: input, shape index: {}]
  %s1 = inlined_call_operand.vmem [shape: f32[8,2], index: 1, kind: input, shape index: {}]
  %s2 = inlined_call_operand.vmem [shape: f32[8,1], index: 2, kind: input, shape index: {}]
  %s3 = inlined_call_operand.vmem [shape: f32[8,1], index: 3, kind: input, shape index: {}]
  %s4 = inlined_call_operand.<no memory space> [shape: f32[1], index: 4, kind: input, shape index: {}]
  %s5 = inlined_call_operand.hbm [shape: f32[1,128], index: 5, kind: output, shape index: {}]
  %s6 = sld [smem:[#allocation0]]
  $region30: #{tpu_custom_call.1} parent=0
    _
  %s8 = ssub.s32 1, %s6
  %s9 = scalar_select 0, %s8, %s6
  %10 = sst [smem:[#allocation2]] %s4
  $region1: #{tpu_custom_call.1} parent=0
    #allocation3 [shape = 'u8[512]{0}', space=vmem, size = 0x400, scoped, tag = 'output window, operand 0, single buffered']
    #allocation4 [shape = 's32[1]{0}', space=sflag, size = 0x4, scoped, tag = 'scoped memory for tpu_custom_call.1']
    %11 = vsyncpa [#allocation4], 0
    // Predicated region
    $region2: #{tpu_custom_call.1} parent=1 // pred_check
      _
    $region3: #{tpu_custom_call.1} parent=1 // pred_check_branch
      %13 = sbr.rel (0) target = $region5
    $region4: #{tpu_custom_call.1} parent=1 // pred_region
      _
    $region5: #{tpu_custom_call.1} parent=1 // pred_fallthru
      _
    // Predicated region
    $region6: #{tpu_custom_call.1} parent=1 // pred_check
      _
    $region7: #{tpu_custom_call.1} parent=1 // pred_check_branch
      %15 = sbr.rel (0) target = $region9
    $region8: #{tpu_custom_call.1} parent=1 // pred_region
      _
    $region9: #{tpu_custom_call.1} parent=1 // pred_fallthru
      _
    // Predicated region
    $region10: #{tpu_custom_call.1} parent=1 // pred_check
      _
    $region11: #{tpu_custom_call.1} parent=1 // pred_check_branch
      %17 = sbr.rel (0) target = $region13
    $region12: #{tpu_custom_call.1} parent=1 // pred_region
      _
    $region13: #{tpu_custom_call.1} parent=1 // pred_fallthru
      _
    // Predicated region
    $region14: #{tpu_custom_call.1} parent=1 // pred_check
      _
    $region15: #{tpu_custom_call.1} parent=1 // pred_check_branch
      %19 = sbr.rel (0) target = $region17
    $region16: #{tpu_custom_call.1} parent=1 // pred_region
      _
    $region17: #{tpu_custom_call.1} parent=1 // pred_fallthru
      _
    // Predicated region
    $region18: #{tpu_custom_call.1} parent=1 // pred_check
      _
    $region19: #{tpu_custom_call.1} parent=1 // pred_check_branch
      %21 = sbr.rel (0) target = $region21
    $region20: #{tpu_custom_call.1} parent=1 // pred_region
      _
    $region21: #{tpu_custom_call.1} parent=1 // pred_fallthru
      _
    %v22 = vld [vmem:[%s0] sm:$0x3]
    %v23 = vld [vmem:[%s1] sm:$0xff]
    %v24 = vld [vmem:[%s2] sm:$0xff]
    %26 = vset.pattern.permute.xlu0 0
    %27 = vperm.xlu0 %26, %v23
    %v28 = vpop.permute.xlu0 %27
    %v30 = vlaneseq
    %v31 = vshrl.u32 %v30, 7
    %v32 = vsub.s32 0, %v31
    %v33 = vrot.slane %v22, %v32
    %v34 = vmul.f32 %v28, %v33
    %36 = vset.pattern.permute.xlu0 0
    %37 = vperm.xlu0 %36, %v24
    %v38 = vpop.permute.xlu0 %37
    %v40 = vadd.f32 %v38, %v34
    %41 = vset.pattern.permute.xlu0 1
    %42 = vperm.xlu0 %41, %v23
    %v43 = vpop.permute.xlu0 %42
    %v45 = vlaneseq
    %v46 = vshrl.u32 %v45, 7
    %v47 = vsub.s32 1, %v46
    %v48 = vrot.slane %v22, %v47
    %v49 = vmul.f32 %v43, %v48
    %v50 = vadd.f32 %v40, %v49
    %v51 = vtanh.pop %v50
    %v52 = vld [vmem:[%s3] sm:$0xff]
    %54 = vset.pattern.permute.xlu0 0
    %55 = vperm.xlu0 %54, %v52
    %v56 = vpop.permute.xlu0 %55
    %v58 = vmul.f32 %v56, %v51
    %v59 = vrot.slane %v58, 4
    %v60 = vadd.f32 %v58, %v59
    %v61 = vrot.slane %v60, 2
    %v62 = vadd.f32 %v60, %v61
    %v63 = vrot.slane %v62, 1
    %v64 = vadd.f32 %v62, %v63
    %s65 = sld [smem:[#allocation2]]
    %v66 = vstv %s65
    %v67 = vadd.f32 %v64, %v66
    %v68 = vxor.u32 %v67, 2147483648
    %v69 = vmul.f32 %v68, 1.442695
    %v70 = vpow.pop %v69
    %v71 = vadd.f32 %v70, 1.0
    %v72 = vrcp.pop %v71
    %v73 = vmul.f32 1.0, %v72
    %74 = vst [vmem:[#allocation3] sm:$0x1] %v73
    // Predicated region
    $region22: #{tpu_custom_call.1} parent=1 // pred_check
      _
    $region23: #{tpu_custom_call.1} parent=1 // pred_check_branch
      %76 = sbr.rel (0) target = $region25
    $region24: #{tpu_custom_call.1} parent=1 // pred_region
      %s78 = ssub.s32 16, 16
      %79 = vsyncadd [#allocation4], %s78
      %s81 = sshll.u32 [#allocation3], 4
      %s82 = int_to_ptr.vmem [resolvable:$true] %s81
      %84 = dma.vmem_to_hbm [thread:$0]  %s82, 16, %s5, [#allocation4]
    $region25: #{tpu_custom_call.1} parent=1 // pred_fallthru
      _
    // Predicated region
    $region26: #{tpu_custom_call.1} parent=1 // pred_check
      _
    $region27: #{tpu_custom_call.1} parent=1 // pred_check_branch
      %86 = sbr.rel (0) target = $region29
    $region28: #{tpu_custom_call.1} parent=1 // pred_region
      %87 = dma.done [#allocation4], 16
    $region29: #{tpu_custom_call.1} parent=1 // pred_fallthru
      _
    %88 = vsyncpa [#allocation4], 1

</llo_original>
